<compile_context>
chip_gen: v5e
topology: v5e:2x2
jax: 0.10.0
libtpu: 0.0.40
codegen_flags: <defaults>
</compile_context>

<pallas_src>
import functools

import jax
import jax.numpy as jnp
from jax import lax
from jax.experimental import pallas as pl
from jax.experimental.pallas import tpu as pltpu

C_IN = 32
C_OUT = 32
KH, KW = 3, 3
K_IM2COL = KH * KW * C_IN          # 288
BN_EPS = 1e-5


def conv_bn_kernel(x_ref, w_ref, shift_ref, o_ref, xflat_ref, patches_ref,
                   *, H, W):
    # x_ref:       (1, C_IN, H*W)        f32  one image, channel-major (lane-dense)
    # w_ref:       (C_OUT, 288)          bf16 im2col weight (BN scale folded in),
    #                                         K ordered (kh, kw, ci)
    # shift_ref:   (C_OUT, 1)            f32  beta - running_mean * scale
    # o_ref:       (C_OUT, H*W)          f32  lane-dense output slab (NCHW layout)
    # xflat_ref:   (C_IN, H*W + 2W + 2)  bf16 flat zero-padded image scratch
    # patches_ref: (288, H*W)            bf16 im2col buffer (K on sublanes)
    HW = H * W
    PAD = W + 1

    # Zero only the two (C_IN, W+1) border strips; the interior is overwritten.
    xflat_ref[:, :PAD] = jnp.zeros((C_IN, PAD), jnp.bfloat16)
    xflat_ref[:, PAD + HW:] = jnp.zeros((C_IN, PAD), jnp.bfloat16)
    # Single f32 -> bf16 cast of the whole image.
    xflat_ref[:, PAD:PAD + HW] = x_ref[0].astype(jnp.bfloat16)

    # Left/right image-border masks over the flat spatial (lane) index.
    sidx = lax.broadcasted_iota(jnp.int32, (C_IN, HW), 1)
    if W & (W - 1) == 0:               # power-of-two W: cheap bitwise column idx
        col = jnp.bitwise_and(sidx, W - 1)
    else:
        col = sidx % W
    mask_l = col > 0                   # valid lanes for a dw = -1 tap
    mask_r = col < (W - 1)             # valid lanes for a dw = +1 tap

    # im2col: 9 lane-dense (C_IN, HW) taps, stored at sublane offsets t*C_IN
    # (full 128-lane stores, sublane-aligned).  Top/bottom border comes from the
    # zero pad of the flat buffer; left/right border from the column masks.
    for kh in range(KH):
        for kw in range(KW):
            t = kh * KW + kw
            d = (kh - 1) * W + (kw - 1)
            tap = xflat_ref[:, PAD + d:PAD + d + HW]
            if kw == 0:
                tap = jnp.where(mask_l, tap, 0.0)
            elif kw == KW - 1:
                tap = jnp.where(mask_r, tap, 0.0)
            patches_ref[t * C_IN:(t + 1) * C_IN, :] = tap

    # Single MXU matmul, K = 288: (C_OUT, K) x (K, H*W) -> (C_OUT, H*W), f32 acc.
    acc = lax.dot_general(w_ref[...], patches_ref[...],
                          dimension_numbers=(((1,), (0,)), ((), ())),
                          preferred_element_type=jnp.float32)

    # BN scale already folded into the weights; only the shift add remains.
    o_ref[...] = (acc + shift_ref[...]).astype(o_ref.dtype)


def conv_bn_forward(x_nchw, weight, gamma, beta, running_mean, running_var):
    """x_nchw: (N, 32, H, W) float32. Returns (N, 32, H, W) float32."""
    N, C, H, W = x_nchw.shape
    assert C == C_IN
    HW = H * W

    # NCHW is already channel-major: a free reshape gives the (C, H*W) layout
    # the kernel wants (no NHWC transpose, no HBM round trip).
    x_flat = x_nchw.reshape(N, C_IN, HW)

    # Fold eval-mode BN into the conv:  y = (W*x) * scale + shift
    #   scale = gamma / sqrt(var + eps)  -> folded into the weight
    #   shift = beta - mean * scale      -> added in-kernel
    scale = (gamma / jnp.sqrt(running_var + BN_EPS)).astype(jnp.float32)
    shift = (beta - running_mean * scale).astype(jnp.float32).reshape(C_OUT, 1)

    # PyTorch weight (C_OUT, C_IN, KH, KW) * scale -> (C_OUT, KH, KW, C_IN)
    # -> (C_OUT, 288) with K ordered (kh, kw, ci) to match the patch buffer.
    w_folded = weight * scale.reshape(C_OUT, 1, 1, 1)
    w2 = jnp.transpose(w_folded, (0, 2, 3, 1)).reshape(C_OUT, K_IM2COL)
    w2 = w2.astype(jnp.bfloat16)

    kernel = functools.partial(conv_bn_kernel, H=H, W=W)

    out = pl.pallas_call(
        kernel,
        out_shape=jax.ShapeDtypeStruct((N * C_OUT, HW), jnp.float32),
        grid_spec=pltpu.PrefetchScalarGridSpec(
            num_scalar_prefetch=0,
            grid=(N,),
            in_specs=[
                pl.BlockSpec((1, C_IN, HW), lambda n: (n, 0, 0)),
                pl.BlockSpec((C_OUT, K_IM2COL), lambda n: (0, 0)),
                pl.BlockSpec((C_OUT, 1), lambda n: (0, 0)),
            ],
            out_specs=pl.BlockSpec((C_OUT, HW), lambda n: (n, 0)),
            scratch_shapes=[
                pltpu.VMEM((C_IN, HW + 2 * (W + 1)), jnp.bfloat16),
                pltpu.VMEM((K_IM2COL, HW), jnp.bfloat16),
            ],
        ),
        compiler_params=pltpu.CompilerParams(
            dimension_semantics=("parallel",)),
    )(x_flat, w2, shift)

    # (N*C_OUT, H*W) is already channel-major per image: a pure row-major
    # reshape gives NCHW (no output transpose needed).
    return out.reshape(N, C_OUT, H, W)


def _reference(x_nchw, weight, gamma, beta, running_mean, running_var):
    """Pure-JAX f32 reference (lax conv + folded BN) for a correctness check."""
    y = lax.conv_general_dilated(
        x_nchw, weight,
        window_strides=(1, 1), padding=((1, 1), (1, 1)),
        dimension_numbers=("NCHW", "OIHW", "NCHW"))
    scale = (gamma / jnp.sqrt(running_var + BN_EPS)).reshape(1, C_OUT, 1, 1)
    shift = (beta - running_mean * gamma / jnp.sqrt(running_var + BN_EPS)
             ).reshape(1, C_OUT, 1, 1)
    return y * scale + shift


if __name__ == "__main__":
    key = jax.random.PRNGKey(0)
    k_x, k_w, k_g, k_b, k_m, k_v = jax.random.split(key, 6)

    N, H, W = 2, 16, 16
    x = jax.random.normal(k_x, (N, C_IN, H, W), dtype=jnp.float32)

    # Deterministic synthetic parameters (shapes from nn.Conv2d / nn.BatchNorm2d).
    # TODO(synk): training-mode BatchNorm (batch statistics) is not implemented;
    # the kernel implements eval-mode BN with running statistics folded in.
    weight = 0.1 * jax.random.normal(k_w, (C_OUT, C_IN, KH, KW), dtype=jnp.float32)
    gamma = 1.0 + 0.05 * jax.random.normal(k_g, (C_OUT,), dtype=jnp.float32)
    beta = 0.1 * jax.random.normal(k_b, (C_OUT,), dtype=jnp.float32)
    running_mean = 0.05 * jax.random.normal(k_m, (C_OUT,), dtype=jnp.float32)
    running_var = jnp.abs(1.0 + 0.1 * jax.random.normal(k_v, (C_OUT,), dtype=jnp.float32))

    out = conv_bn_forward(x, weight, gamma, beta, running_mean, running_var)
    out = jax.block_until_ready(out)

    ref = _reference(x, weight, gamma, beta, running_mean, running_var)
    assert out.shape == (N, C_OUT, H, W)
    # bf16 matmul operands (f32 accumulation) -> widened tolerance vs. f32 ref.
    assert jnp.allclose(out, ref, atol=5e-2, rtol=5e-2), "mismatch vs reference"

    print("KERNEL_OK")
</pallas_src>

<mosaic_0001>
module attributes {stable_mosaic.version = 11 : i64} {
  func.func @conv_bn_kernel(%arg0: i32, %arg1: memref<1x32x256xf32, #tpu.memory_space<vmem>>, %arg2: memref<32x288xbf16, #tpu.memory_space<vmem>>, %arg3: memref<32x1xf32, #tpu.memory_space<vmem>>, %arg4: memref<32x256xf32, #tpu.memory_space<vmem>>, %arg5: memref<32x290xbf16, #tpu.memory_space<vmem>>, %arg6: memref<288x256xbf16, #tpu.memory_space<vmem>>) attributes {dimension_semantics = [#tpu.dimension_semantics<parallel>], iteration_bounds = array<i64: 2>, scalar_prefetch = 0 : i64, scratch_operands = 2 : i64, tpu.core_type = #tpu.core_type<tc>, window_params = [{transform_indices = @transform_0, window_bounds = array<i64: 1, 32, 256>}, {pipeline_mode = #tpu.pipeline_mode<synchronous>, transform_indices = @transform_1, window_bounds = array<i64: 32, 288>}, {pipeline_mode = #tpu.pipeline_mode<synchronous>, transform_indices = @transform_2, window_bounds = array<i64: 32, 1>}, {transform_indices = @transform_3, window_bounds = array<i64: 32, 256>}]} {
    %cst = arith.constant 0.000000e+00 : bf16
    %0 = vector.broadcast %cst : bf16 to vector<32x17xbf16>
    %c0 = arith.constant 0 : index
    %c0_0 = arith.constant 0 : index
    %1 = vector.load %arg5[%c0, %c0_0] : memref<32x290xbf16, #tpu.memory_space<vmem>>, vector<32x17xbf16>
    tpu.vector_store %arg5[%c0, %c0_0], %0 {strides = array<i32>} : memref<32x290xbf16, #tpu.memory_space<vmem>>, vector<32x17xbf16>,
    %cst_1 = arith.constant 0.000000e+00 : bf16
    %2 = vector.broadcast %cst_1 : bf16 to vector<32x17xbf16>
    %c0_2 = arith.constant 0 : index
    %c273 = arith.constant 273 : index
    %3 = vector.load %arg5[%c0_2, %c273] : memref<32x290xbf16, #tpu.memory_space<vmem>>, vector<32x17xbf16>
    tpu.vector_store %arg5[%c0_2, %c273], %2 {strides = array<i32>} : memref<32x290xbf16, #tpu.memory_space<vmem>>, vector<32x17xbf16>,
    %c0_3 = arith.constant 0 : index
    %c0_4 = arith.constant 0 : index
    %c0_5 = arith.constant 0 : index
    %4 = vector.load %arg1[%c0_3, %c0_4, %c0_5] : memref<1x32x256xf32, #tpu.memory_space<vmem>>, vector<1x32x256xf32>
    %5 = vector.shape_cast %4 : vector<1x32x256xf32> to vector<32x256xf32>
    %6 = arith.truncf %5 : vector<32x256xf32> to vector<32x256xbf16>
    %c0_6 = arith.constant 0 : index
    %c17 = arith.constant 17 : index
    %7 = vector.load %arg5[%c0_6, %c17] : memref<32x290xbf16, #tpu.memory_space<vmem>>, vector<32x256xbf16>
    tpu.vector_store %arg5[%c0_6, %c17], %6 {strides = array<i32>} : memref<32x290xbf16, #tpu.memory_space<vmem>>, vector<32x256xbf16>,
    %8 = tpu.iota {dimensions = array<i32: 1>} : vector<32x256xi32>
    %c15_i32 = arith.constant 15 : i32
    %9 = vector.broadcast %c15_i32 : i32 to vector<32x256xi32>
    %10 = arith.andi %8, %9 : vector<32x256xi32>
    %c0_i32 = arith.constant 0 : i32
    %11 = vector.broadcast %c0_i32 : i32 to vector<32x256xi32>
    %12 = arith.cmpi sgt, %10, %11 : vector<32x256xi32>
    %c15_i32_7 = arith.constant 15 : i32
    %13 = vector.broadcast %c15_i32_7 : i32 to vector<32x256xi32>
    %14 = arith.cmpi slt, %10, %13 : vector<32x256xi32>
    %c0_8 = arith.constant 0 : index
    %c0_9 = arith.constant 0 : index
    %15 = vector.load %arg5[%c0_8, %c0_9] : memref<32x290xbf16, #tpu.memory_space<vmem>>, vector<32x256xbf16>
    %cst_10 = arith.constant 0.000000e+00 : f32
    %16 = arith.truncf %cst_10 : f32 to bf16
    %17 = vector.broadcast %16 : bf16 to vector<32x256xbf16>
    %18 = arith.select %12, %15, %17 : vector<32x256xi1>, vector<32x256xbf16>
    %c0_11 = arith.constant 0 : index
    %c0_12 = arith.constant 0 : index
    %19 = vector.load %arg6[%c0_11, %c0_12] : memref<288x256xbf16, #tpu.memory_space<vmem>>, vector<32x256xbf16>
    tpu.vector_store %arg6[%c0_11, %c0_12], %18 {strides = array<i32>} : memref<288x256xbf16, #tpu.memory_space<vmem>>, vector<32x256xbf16>,
    %c0_13 = arith.constant 0 : index
    %c1 = arith.constant 1 : index
    %20 = vector.load %arg5[%c0_13, %c1] : memref<32x290xbf16, #tpu.memory_space<vmem>>, vector<32x256xbf16>
    %c32 = arith.constant 32 : index
    %c0_14 = arith.constant 0 : index
    %21 = vector.load %arg6[%c32, %c0_14] : memref<288x256xbf16, #tpu.memory_space<vmem>>, vector<32x256xbf16>
    tpu.vector_store %arg6[%c32, %c0_14], %20 {strides = array<i32>} : memref<288x256xbf16, #tpu.memory_space<vmem>>, vector<32x256xbf16>,
    %c0_15 = arith.constant 0 : index
    %c2 = arith.constant 2 : index
    %22 = vector.load %arg5[%c0_15, %c2] : memref<32x290xbf16, #tpu.memory_space<vmem>>, vector<32x256xbf16>
    %cst_16 = arith.constant 0.000000e+00 : f32
    %23 = arith.truncf %cst_16 : f32 to bf16
    %24 = vector.broadcast %23 : bf16 to vector<32x256xbf16>
    %25 = arith.select %14, %22, %24 : vector<32x256xi1>, vector<32x256xbf16>
    %c64 = arith.constant 64 : index
    %c0_17 = arith.constant 0 : index
    %26 = vector.load %arg6[%c64, %c0_17] : memref<288x256xbf16, #tpu.memory_space<vmem>>, vector<32x256xbf16>
    tpu.vector_store %arg6[%c64, %c0_17], %25 {strides = array<i32>} : memref<288x256xbf16, #tpu.memory_space<vmem>>, vector<32x256xbf16>,
    %c0_18 = arith.constant 0 : index
    %c16 = arith.constant 16 : index
    %27 = vector.load %arg5[%c0_18, %c16] : memref<32x290xbf16, #tpu.memory_space<vmem>>, vector<32x256xbf16>
    %cst_19 = arith.constant 0.000000e+00 : f32
    %28 = arith.truncf %cst_19 : f32 to bf16
    %29 = vector.broadcast %28 : bf16 to vector<32x256xbf16>
    %30 = arith.select %12, %27, %29 : vector<32x256xi1>, vector<32x256xbf16>
    %c96 = arith.constant 96 : index
    %c0_20 = arith.constant 0 : index
    %31 = vector.load %arg6[%c96, %c0_20] : memref<288x256xbf16, #tpu.memory_space<vmem>>, vector<32x256xbf16>
    tpu.vector_store %arg6[%c96, %c0_20], %30 {strides = array<i32>} : memref<288x256xbf16, #tpu.memory_space<vmem>>, vector<32x256xbf16>,
    %c0_21 = arith.constant 0 : index
    %c17_22 = arith.constant 17 : index
    %32 = vector.load %arg5[%c0_21, %c17_22] : memref<32x290xbf16, #tpu.memory_space<vmem>>, vector<32x256xbf16>
    %c128 = arith.constant 128 : index
    %c0_23 = arith.constant 0 : index
    %33 = vector.load %arg6[%c128, %c0_23] : memref<288x256xbf16, #tpu.memory_space<vmem>>, vector<32x256xbf16>
    tpu.vector_store %arg6[%c128, %c0_23], %32 {strides = array<i32>} : memref<288x256xbf16, #tpu.memory_space<vmem>>, vector<32x256xbf16>,
    %c0_24 = arith.constant 0 : index
    %c18 = arith.constant 18 : index
    %34 = vector.load %arg5[%c0_24, %c18] : memref<32x290xbf16, #tpu.memory_space<vmem>>, vector<32x256xbf16>
    %cst_25 = arith.constant 0.000000e+00 : f32
    %35 = arith.truncf %cst_25 : f32 to bf16
    %36 = vector.broadcast %35 : bf16 to vector<32x256xbf16>
    %37 = arith.select %14, %34, %36 : vector<32x256xi1>, vector<32x256xbf16>
    %c160 = arith.constant 160 : index
    %c0_26 = arith.constant 0 : index
    %38 = vector.load %arg6[%c160, %c0_26] : memref<288x256xbf16, #tpu.memory_space<vmem>>, vector<32x256xbf16>
    tpu.vector_store %arg6[%c160, %c0_26], %37 {strides = array<i32>} : memref<288x256xbf16, #tpu.memory_space<vmem>>, vector<32x256xbf16>,
    %c0_27 = arith.constant 0 : index
    %c32_28 = arith.constant 32 : index
    %39 = vector.load %arg5[%c0_27, %c32_28] : memref<32x290xbf16, #tpu.memory_space<vmem>>, vector<32x256xbf16>
    %cst_29 = arith.constant 0.000000e+00 : f32
    %40 = arith.truncf %cst_29 : f32 to bf16
    %41 = vector.broadcast %40 : bf16 to vector<32x256xbf16>
    %42 = arith.select %12, %39, %41 : vector<32x256xi1>, vector<32x256xbf16>
    %c192 = arith.constant 192 : index
    %c0_30 = arith.constant 0 : index
    %43 = vector.load %arg6[%c192, %c0_30] : memref<288x256xbf16, #tpu.memory_space<vmem>>, vector<32x256xbf16>
    tpu.vector_store %arg6[%c192, %c0_30], %42 {strides = array<i32>} : memref<288x256xbf16, #tpu.memory_space<vmem>>, vector<32x256xbf16>,
    %c0_31 = arith.constant 0 : index
    %c33 = arith.constant 33 : index
    %44 = vector.load %arg5[%c0_31, %c33] : memref<32x290xbf16, #tpu.memory_space<vmem>>, vector<32x256xbf16>
    %c224 = arith.constant 224 : index
    %c0_32 = arith.constant 0 : index
    %45 = vector.load %arg6[%c224, %c0_32] : memref<288x256xbf16, #tpu.memory_space<vmem>>, vector<32x256xbf16>
    tpu.vector_store %arg6[%c224, %c0_32], %44 {strides = array<i32>} : memref<288x256xbf16, #tpu.memory_space<vmem>>, vector<32x256xbf16>,
    %c0_33 = arith.constant 0 : index
    %c34 = arith.constant 34 : index
    %46 = vector.load %arg5[%c0_33, %c34] : memref<32x290xbf16, #tpu.memory_space<vmem>>, vector<32x256xbf16>
    %cst_34 = arith.constant 0.000000e+00 : f32
    %47 = arith.truncf %cst_34 : f32 to bf16
    %48 = vector.broadcast %47 : bf16 to vector<32x256xbf16>
    %49 = arith.select %14, %46, %48 : vector<32x256xi1>, vector<32x256xbf16>
    %c256 = arith.constant 256 : index
    %c0_35 = arith.constant 0 : index
    %50 = vector.load %arg6[%c256, %c0_35] : memref<288x256xbf16, #tpu.memory_space<vmem>>, vector<32x256xbf16>
    tpu.vector_store %arg6[%c256, %c0_35], %49 {strides = array<i32>} : memref<288x256xbf16, #tpu.memory_space<vmem>>, vector<32x256xbf16>,
    %c0_36 = arith.constant 0 : index
    %c0_37 = arith.constant 0 : index
    %51 = vector.load %arg2[%c0_36, %c0_37] : memref<32x288xbf16, #tpu.memory_space<vmem>>, vector<32x288xbf16>
    %c0_38 = arith.constant 0 : index
    %c0_39 = arith.constant 0 : index
    %52 = vector.load %arg6[%c0_38, %c0_39] : memref<288x256xbf16, #tpu.memory_space<vmem>>, vector<288x256xbf16>
    %cst_40 = arith.constant dense<0.000000e+00> : vector<32x256xf32>
    %53 = tpu.matmul %51, %52, %cst_40 {dimension_numbers = #tpu.dot_dimension_numbers<[1], [0], [0], [1], [0, 0, 1, 1], [], []>} : vector<32x288xbf16>, vector<288x256xbf16>, vector<32x256xf32> -> vector<32x256xf32>
    %c0_41 = arith.constant 0 : index
    %c0_42 = arith.constant 0 : index
    %54 = vector.load %arg3[%c0_41, %c0_42] : memref<32x1xf32, #tpu.memory_space<vmem>>, vector<32x1xf32>
    %55 = vector.broadcast %54 : vector<32x1xf32> to vector<32x256xf32>
    %56 = arith.addf %53, %55 : vector<32x256xf32>
    %c0_43 = arith.constant 0 : index
    %c0_44 = arith.constant 0 : index
    %57 = vector.load %arg4[%c0_43, %c0_44] : memref<32x256xf32, #tpu.memory_space<vmem>>, vector<32x256xf32>
    tpu.vector_store %arg4[%c0_43, %c0_44], %56 {strides = array<i32>} : memref<32x256xf32, #tpu.memory_space<vmem>>, vector<32x256xf32>,
    return
  }
  func.func @transform_0(%arg0: i32) -> (i32, i32, i32) {
    %c0_i32 = arith.constant 0 : i32
    %c0_i32_0 = arith.constant 0 : i32
    %c0_i32_1 = arith.constant 0 : i32
    return %arg0, %c0_i32, %c0_i32_0 : i32, i32, i32
  }
  func.func @transform_1(%arg0: i32) -> (i32, i32) {
    %c0_i32 = arith.constant 0 : i32
    %c0_i32_0 = arith.constant 0 : i32
    %c0_i32_1 = arith.constant 0 : i32
    return %c0_i32, %c0_i32_0 : i32, i32
  }
  func.func @transform_2(%arg0: i32) -> (i32, i32) {
    %c0_i32 = arith.constant 0 : i32
    %c0_i32_0 = arith.constant 0 : i32
    %c0_i32_1 = arith.constant 0 : i32
    return %c0_i32, %c0_i32_0 : i32, i32
  }
  func.func @transform_3(%arg0: i32) -> (i32, i32) {
    %c0_i32 = arith.constant 0 : i32
    %c0_i32_0 = arith.constant 0 : i32
    return %arg0, %c0_i32 : i32, i32
  }
}

</mosaic_0001>

<llo_original>
// kernel: tpu_custom_call.1
$region0: #{tpu_custom_call.1}
  #allocation0 [shape = 'u32[]', space=smem, size = 0x4, offset = 0x4, fixed_abs, tag = 'smem constant byte address 0x4 - core index']
  #allocation1 [shape = 'u32[72,128]{1,0:T(1,128)}', space=vmem, size = 0x9000, scoped, tag = 'internal scratch']
  #allocation2 [shape = 'bf16[32,290]{1,0:T(8,128)(2,1)}', space=vmem, size = 0x6000, scoped, tag = 'scratch operand']
  #allocation3 [shape = 'bf16[288,256]{1,0:T(8,128)(2,1)}', space=vmem, size = 0x24000, scoped, tag = 'scratch operand']
  %s0 = inlined_call_operand.hbm [shape: f32[2,32,256], index: 0, kind: input, shape index: {}]
  %s1 = inlined_call_operand.hbm [shape: bf16[32,288], index: 1, kind: input, shape index: {}]
  %s2 = inlined_call_operand.vmem [shape: f32[32,1], index: 2, kind: input, shape index: {}]
  %s3 = inlined_call_operand.hbm [shape: f32[64,256], index: 3, kind: output, shape index: {}]
  %s4 = sld [smem:[#allocation0]]
  $region53: #{tpu_custom_call.1} parent=0
    _
  %s6 = ssub.s32 1, %s4
  %s7 = scalar_select 0, %s6, %s4
  $region1: #{tpu_custom_call.1} parent=0
    #allocation4 [shape = 'u8[65536]{0}', space=vmem, size = 0x10000, scoped, tag = 'input window, operand 0']
    #allocation5 [shape = 's32[2]{0}', space=sflag, size = 0x8, scoped, tag = 'scoped memory for tpu_custom_call.1']
    #allocation6 [shape = 's32[2]{0}', space=sflag, size = 0x8, scoped, tag = 'scoped memory for tpu_custom_call.1']
    #allocation7 [shape = 'u8[24576]{0}', space=vmem, size = 0x6000, scoped, tag = 'input window, operand 1, single buffered']
    #allocation8 [shape = 's32[1]{0}', space=sflag, size = 0x4, scoped, tag = 'scoped memory for tpu_custom_call.1']
    #allocation9 [shape = 'u8[65536]{0}', space=vmem, size = 0x10000, scoped, tag = 'output window, operand 0']
    %8 = vsyncpa [#allocation5], 0
    %s9 = scalar_lea.sflag [#allocation5], 1
    %10 = vsyncpa %s9, 0
    %11 = vsyncpa [#allocation8], 0
    %12 = vsyncpa [#allocation6], 0
    %s13 = scalar_lea.sflag [#allocation6], 1
    %14 = vsyncpa %s13, 0
    loop: start=0, step=1, limit=4
    $region2: #{tpu_custom_call.1} parent=1 // loop_pre_header
      _
    $region3: #{tpu_custom_call.1} parent=1 // loop_header
      %s16 = sphi 0, %s20
      %p17 = scmp.ge.s32.totalorder %s16, 4
      %s26 = sphi 0, %s28
      %s29 = sphi 0, %s26
      %s30 = sphi 0, %s29
      %s46 = sphi 0, %s30
      %s50 = sphi 0, %s50
      %s52 = sphi 0, %s50
      %s53 = sphi 0, %s52
      %s67 = sphi 0, %s53
      %s71 = sphi 0, %s71
      %s73 = sphi 0, %s71
      %s74 = sphi 0, %s73
      %s88 = sphi 0, %s74
      %s94 = sphi 0, %s96
      %s97 = sphi 0, %s94
      %s98 = sphi 0, %s97
      %s114 = sphi 0, %s98
    $region4: #{tpu_custom_call.1} parent=1 // loop_header_branch
      %19 = sbr.rel (%p17) target = $region8
    $region5: #{tpu_custom_call.1} parent=1 // loop_body
      %s21 = ssub.s32 %s16, 1
      %s22 = ssub.s32 %s16, 2
      %s23 = sadd.s32 %s16, 1
      %s24 = ssub.s32 %s16, %s23
      %p25 = scmp.eq.s32.totalorder %s24, 0
      %s27 = sadd.s32 %s26, 1
      %s28 = scalar_select %p25, %s26, %s27
      %p31 = pneg %p25
      %p32 = scmp.eq.s32.totalorder %s16, 1
      %p33 = por %p31, %p32
      %p34 = scmp.ne.s32.totalorder %s26, %s29
      %p35 = scmp.eq.s32.totalorder %s16, 0
      %p36 = por %p34, %p35
      %p37 = scmp.ne.s32.totalorder %s26, %s29
      %p38 = scmp.eq.s32.totalorder %s21, 1
      %p39 = por %p37, %p38
      %p40 = scmp.ne.s32.totalorder %s29, %s30
      %p41 = scmp.eq.s32.totalorder %s21, 0
      %p42 = por %p40, %p41
      %p43 = scmp.ne.s32.totalorder %s29, %s30
      %p44 = scmp.eq.s32.totalorder %s22, 1
      %p45 = por %p43, %p44
      %p47 = scmp.ne.s32.totalorder %s30, %s46
      %p48 = scmp.eq.s32.totalorder %s22, 0
      %p49 = por %p47, %p48
      %s51 = sadd.s32 %s50, 1
      %p54 = scmp.eq.s32.totalorder %s16, 1
      %p55 = scmp.ne.s32.totalorder %s50, %s52
      %p56 = scmp.eq.s32.totalorder %s16, 0
      %p57 = por %p55, %p56
      %p58 = scmp.ne.s32.totalorder %s50, %s52
      %p59 = scmp.eq.s32.totalorder %s21, 1
      %p60 = por %p58, %p59
      %p61 = scmp.ne.s32.totalorder %s52, %s53
      %p62 = scmp.eq.s32.totalorder %s21, 0
      %p63 = por %p61, %p62
      %p64 = scmp.ne.s32.totalorder %s52, %s53
      %p65 = scmp.eq.s32.totalorder %s22, 1
      %p66 = por %p64, %p65
      %p68 = scmp.ne.s32.totalorder %s53, %s67
      %p69 = scmp.eq.s32.totalorder %s22, 0
      %p70 = por %p68, %p69
      %s72 = sadd.s32 %s71, 1
      %p75 = scmp.eq.s32.totalorder %s16, 1
      %p76 = scmp.ne.s32.totalorder %s71, %s73
      %p77 = scmp.eq.s32.totalorder %s16, 0
      %p78 = por %p76, %p77
      %p79 = scmp.ne.s32.totalorder %s71, %s73
      %p80 = scmp.eq.s32.totalorder %s21, 1
      %p81 = por %p79, %p80
      %p82 = scmp.ne.s32.totalorder %s73, %s74
      %p83 = scmp.eq.s32.totalorder %s21, 0
      %p84 = por %p82, %p83
      %p85 = scmp.ne.s32.totalorder %s73, %s74
      %p86 = scmp.eq.s32.totalorder %s22, 1
      %p87 = por %p85, %p86
      %p89 = scmp.ne.s32.totalorder %s74, %s88
      %p90 = scmp.eq.s32.totalorder %s22, 0
      %p91 = por %p89, %p90
      %s92 = ssub.s32 %s16, %s23
      %p93 = scmp.eq.s32.totalorder %s92, 0
      %s95 = sadd.s32 %s94, 1
      %s96 = scalar_select %p93, %s94, %s95
      %p99 = pneg %p93
      %p100 = scmp.eq.s32.totalorder %s16, 1
      %p101 = por %p99, %p100
      %p102 = scmp.ne.s32.totalorder %s94, %s97
      %p103 = scmp.eq.s32.totalorder %s16, 0
      %p104 = por %p102, %p103
      %p105 = scmp.ne.s32.totalorder %s94, %s97
      %p106 = scmp.eq.s32.totalorder %s21, 1
      %p107 = por %p105, %p106
      %p108 = scmp.ne.s32.totalorder %s97, %s98
      %p109 = scmp.eq.s32.totalorder %s21, 0
      %p110 = por %p108, %p109
      %p111 = scmp.ne.s32.totalorder %s97, %s98
      %p112 = scmp.eq.s32.totalorder %s22, 1
      %p113 = por %p111, %p112
      %p115 = scmp.ne.s32.totalorder %s98, %s114
      %p116 = scmp.eq.s32.totalorder %s22, 0
      %p117 = por %p115, %p116
      %p118 = scmp.le.s32.totalorder 1, %s16
      %p119 = scmp.lt.s32.totalorder %s16, 3
      %p120 = pnand %p118, %p119
      %p121 = pneg %p120
      // Predicated region
      $region9: #{tpu_custom_call.1} parent=5 // pred_check
        _
      $region10: #{tpu_custom_call.1} parent=5 // pred_check_branch
        %123 = sbr.rel (%p120) target = $region12
      $region11: #{tpu_custom_call.1} parent=5 // pred_region
        %s124 = ssub.s32 %s16, 1
        // Predicated region
        $region13: #{tpu_custom_call.1} parent=11 // pred_check
          %p125 = pneg %p63
        $region14: #{tpu_custom_call.1} parent=11 // pred_check_branch
          %127 = sbr.rel (%p125) target = $region16
        $region15: #{tpu_custom_call.1} parent=11 // pred_region
          %129 = vsyncadd [#allocation8], 0
          %s130 = sshll.u32 %s1, 4
          %s131 = int_to_ptr.hbm [resolvable:$true] %s130
          %s132 = sshll.u32 [#allocation7], 4
          %s133 = int_to_ptr.vmem [resolvable:$true] %s132
          %138 = dma.hbm_to_vmem [thread:$0]  %s131, 768, %s133, [#allocation8], 192, 192, 12
        $region16: #{tpu_custom_call.1} parent=11 // pred_fallthru
          _
        // Predicated region
        $region17: #{tpu_custom_call.1} parent=11 // pred_check
          %p139 = pneg %p84
        $region18: #{tpu_custom_call.1} parent=11 // pred_check_branch
          %141 = sbr.rel (%p139) target = $region20
        $region19: #{tpu_custom_call.1} parent=11 // pred_region
          _
        $region20: #{tpu_custom_call.1} parent=11 // pred_fallthru
          _
      $region12: #{tpu_custom_call.1} parent=5 // pred_fallthru
        _
      %p142 = scmp.lt.s32.totalorder %s16, 2
      // Predicated region
      $region21: #{tpu_custom_call.1} parent=5 // pred_check
        %p143 = pneg %p142
      $region22: #{tpu_custom_call.1} parent=5 // pred_check_branch
        %145 = sbr.rel (%p143) target = $region24
      $region23: #{tpu_custom_call.1} parent=5 // pred_region
        // Predicated region
        $region25: #{tpu_custom_call.1} parent=23 // pred_check
          %p146 = pneg %p36
        $region26: #{tpu_custom_call.1} parent=23 // pred_check_branch
          %148 = sbr.rel (%p146) target = $region28
        $region27: #{tpu_custom_call.1} parent=23 // pred_region
          %s149 = sand.u32 %s26, 1
          %s150 = scalar_lea.sflag [#allocation5], %s149
          %s151 = sand.u32 %s26, 1
          %s152 = smul.addr %s151, 64
          %s153 = scalar_lea.vmem [#allocation4], %s152
          %155 = vsyncadd %s150, 0
          %s156 = smul.addr %s16, 8
          %s157 = smul.addr %s156, 8
          %s158 = scalar_lea.hbm %s0, %s157
          %s159 = sshll.u32 %s158, 4
          %s160 = int_to_ptr.hbm [resolvable:$true] %s159
          %s161 = sshll.u32 %s153, 4
          %s162 = int_to_ptr.vmem [resolvable:$true] %s161
          %167 = dma.hbm_to_vmem [thread:$0]  %s160, 1024, %s162, %s150, 256, 256, 16
        $region28: #{tpu_custom_call.1} parent=23 // pred_fallthru
          _
      $region24: #{tpu_custom_call.1} parent=5 // pred_fallthru
        _
      %p168 = scmp.le.s32.totalorder 1, %s16
      %p169 = scmp.lt.s32.totalorder %s16, 3
      %p170 = pnand %p168, %p169
      %p171 = pneg %p170
      // Predicated region
      $region29: #{tpu_custom_call.1} parent=5 // pred_check
        _
      $region30: #{tpu_custom_call.1} parent=5 // pred_check_branch
        %173 = sbr.rel (%p170) target = $region32
      $region31: #{tpu_custom_call.1} parent=5 // pred_region
        %s174 = ssub.s32 %s16, 1
        %s175 = sand.u32 %s29, 1
        %s176 = scalar_lea.sflag [#allocation5], %s175
        %s177 = sand.u32 %s29, 1
        %s178 = smul.addr %s177, 64
        %s179 = scalar_lea.vmem [#allocation4], %s178
        // Predicated region
        $region33: #{tpu_custom_call.1} parent=31 // pred_check
          %p180 = pneg %p42
        $region34: #{tpu_custom_call.1} parent=31 // pred_check_branch
          %182 = sbr.rel (%p180) target = $region36
        $region35: #{tpu_custom_call.1} parent=31 // pred_region
          %184 = dma.done %s176, 1024
        $region36: #{tpu_custom_call.1} parent=31 // pred_fallthru
          _
        // Predicated region
        $region37: #{tpu_custom_call.1} parent=31 // pred_check
          %p185 = pneg %p63
        $region38: #{tpu_custom_call.1} parent=31 // pred_check_branch
          %187 = sbr.rel (%p185) target = $region40
        $region39: #{tpu_custom_call.1} parent=31 // pred_region
          %189 = dma.done [#allocation8], 768
        $region40: #{tpu_custom_call.1} parent=31 // pred_fallthru
          _
        %s190 = sand.u32 %s29, 1
        %s191 = scalar_lea.sflag [#allocation5], %s190
        %s192 = sand.u32 %s29, 1
        %s193 = smul.addr %s192, 64
        %s194 = scalar_lea.vmem [#allocation4], %s193
        %p195 = pneg %p42
        %p196 = pneg %p39
        %p197 = pneg %p63
        %p198 = pneg %p60
        %p199 = pneg %p84
        %p200 = pneg %p81
        %p201 = pneg %p110
        %p202 = pneg %p107
        %s203 = sand.u32 %s97, 1
        %s204 = scalar_lea.sflag [#allocation6], %s203
        %s205 = sand.u32 %s97, 1
        %s206 = smul.addr %s205, 64
        %s207 = scalar_lea.vmem [#allocation9], %s206
        %s208 = smul.u32 4, %s21
        %vm212 = vcmask 134144
        %213 = vst.msk [vmem:[#allocation2] sm:$0xf] %vm212, 0
        %214 = vst.msk [vmem:[#allocation2 + $0xc] sm:$0xf] %vm212, 0
        %215 = vst.msk [vmem:[#allocation2 + $0x18] sm:$0xf] %vm212, 0
        %216 = vst.msk [vmem:[#allocation2 + $0x24] sm:$0xf] %vm212, 0
        %vm217 = vcmask 273544
        %218 = vst.msk [vmem:[#allocation2 + $0x8] sm:$0xf] %vm217, 0
        %219 = vst.msk [vmem:[#allocation2 + $0x14] sm:$0xf] %vm217, 0
        %220 = vst.msk [vmem:[#allocation2 + $0x20] sm:$0xf] %vm217, 0
        %221 = vst.msk [vmem:[#allocation2 + $0x2c] sm:$0xf] %vm217, 0
        %v222 = vld [vmem:[%s179] sm:$0xff]
        %v223 = vld [vmem:[%s179 + $0x8] sm:$0xff]
        %v224 = vld [vmem:[%s179 + $0x10] sm:$0xff]
        %v225 = vld [vmem:[%s179 + $0x18] sm:$0xff]
        %v226 = vld [vmem:[%s179 + $0x20] sm:$0xff]
        %v227 = vld [vmem:[%s179 + $0x28] sm:$0xff]
        %v228 = vld [vmem:[%s179 + $0x30] sm:$0xff]
        %v229 = vld [vmem:[%s179 + $0x38] sm:$0xff]
        %v230 = vpack.c.bf16 %v223, %v222
        %v231 = vpack.c.bf16 %v225, %v224
        %v232 = vpack.c.bf16 %v227, %v226
        %v233 = vpack.c.bf16 %v229, %v228
        %238 = vrot.lane.b32.xlu0 %v230, 17
        %v239 = vpop.permute.xlu0 %238
        %240 = vrot.lane.b32.xlu0 %v231, 17
        %v241 = vpop.permute.xlu0 %240
        %242 = vrot.lane.b32.xlu0 %v232, 17
        %v243 = vpop.permute.xlu0 %242
        %244 = vrot.lane.b32.xlu0 %v233, 17
        %v245 = vpop.permute.xlu0 %244
        %v246 = vrot.slane %v239, 4
        %v247 = vrot.slane %v241, 4
        %v248 = vrot.slane %v243, 4
        %v249 = vrot.slane %v245, 4
        %vm250 = vcmask 138240
        %v251 = vsel %vm250, %v246, %v239
        %v252 = vsel %vm250, %v247, %v241
        %v253 = vsel %vm250, %v248, %v243
        %v254 = vsel %vm250, %v249, %v245
        %vm263 = vcmask 1043592
        %vm264 = vcmask 1047556
        %vm265 = vmor %vm264, %vm263
        %266 = vst.msk [vmem:[#allocation2] sm:$0xff] %vm265, %v251
        %267 = vst.msk [vmem:[#allocation2 + $0x8] sm:$0xf] %vm212, %v246
        %268 = vst.msk [vmem:[#allocation2 + $0xc] sm:$0xff] %vm265, %v252
        %269 = vst.msk [vmem:[#allocation2 + $0x14] sm:$0xf] %vm212, %v247
        %270 = vst.msk [vmem:[#allocation2 + $0x18] sm:$0xff] %vm265, %v253
        %271 = vst.msk [vmem:[#allocation2 + $0x20] sm:$0xf] %vm212, %v248
        %272 = vst.msk [vmem:[#allocation2 + $0x24] sm:$0xff] %vm265, %v254
        %273 = vst.msk [vmem:[#allocation2 + $0x2c] sm:$0xf] %vm212, %v249
        %v274 = vlaneseq
        %v275 = vand.u32 %v274, 127
        %v276 = vadd.s32 %v275, 128
        %v277 = vand.u32 %v275, 15
        %v278 = vand.u32 %v276, 15
        %vm279 = vcmp.gt.s32.totalorder %v277, 0
        %vm280 = vcmp.gt.s32.totalorder %v278, 0
        %vm281 = vcmp.lt.s32.totalorder %v277, 15
        %vm282 = vcmp.lt.s32.totalorder %v278, 15
        %v283 = vld [vmem:[#allocation2] sm:$0xff]
        %v284 = vld [vmem:[#allocation2 + $0xc] sm:$0xff]
        %v285 = vld [vmem:[#allocation2 + $0x18] sm:$0xff]
        %v286 = vld [vmem:[#allocation2 + $0x24] sm:$0xff]
        %vm287 = vmpackc.low %vm280, %vm279
        %v288 = vsel %vm287, %v283, 0
        %v289 = vsel %vm287, %v284, 0
        %v290 = vsel %vm287, %v285, 0
        %v291 = vsel %vm287, %v286, 0
        %292 = vst [vmem:[#allocation3] sm:$0xff] %v288
        %293 = vst [vmem:[#allocation3 + $0x8] sm:$0xff] %v289
        %294 = vst [vmem:[#allocation3 + $0x10] sm:$0xff] %v290
        %295 = vst [vmem:[#allocation3 + $0x18] sm:$0xff] %v291
        %v296 = vld [vmem:[#allocation2] sm:$0xff]
        %v297 = vld [vmem:[#allocation2 + $0x8] sm:$0xf]
        %v298 = vld [vmem:[#allocation2 + $0xc] sm:$0xff]
        %v299 = vld [vmem:[#allocation2 + $0x14] sm:$0xf]
        %v300 = vld [vmem:[#allocation2 + $0x18] sm:$0xff]
        %v301 = vld [vmem:[#allocation2 + $0x20] sm:$0xf]
        %v302 = vld [vmem:[#allocation2 + $0x24] sm:$0xff]
        %v303 = vld [vmem:[#allocation2 + $0x2c] sm:$0xf]
        %312 = vrot.lane.b32.xlu0 %v296, 127
        %v313 = vpop.permute.xlu0 %312
        %314 = vrot.lane.b32.xlu0 %v297, 127
        %v315 = vpop.permute.xlu0 %314
        %316 = vrot.lane.b32.xlu0 %v298, 127
        %v317 = vpop.permute.xlu0 %316
        %318 = vrot.lane.b32.xlu0 %v299, 127
        %v319 = vpop.permute.xlu0 %318
        %320 = vrot.lane.b32.xlu0 %v300, 127
        %v321 = vpop.permute.xlu0 %320
        %322 = vrot.lane.b32.xlu0 %v301, 127
        %v323 = vpop.permute.xlu0 %322
        %324 = vrot.lane.b32.xlu0 %v302, 127
        %v325 = vpop.permute.xlu0 %324
        %326 = vrot.lane.b32.xlu0 %v303, 127
        %v327 = vpop.permute.xlu0 %326
        %v328 = vrot.slane %v313, 4
        %v329 = vrot.slane %v315, 4
        %v330 = vrot.slane %v317, 4
        %v331 = vrot.slane %v319, 4
        %v332 = vrot.slane %v321, 4
        %v333 = vrot.slane %v323, 4
        %v334 = vrot.slane %v325, 4
        %v335 = vrot.slane %v327, 4
        %vm336 = vcmask 1043456
        %v337 = vsel %vm336, %v328, %v329
        %vm338 = vcmask 1039360
        %v339 = vsel %vm338, %v313, %v337
        %v340 = vsel %vm336, %v330, %v331
        %v341 = vsel %vm338, %v317, %v340
        %v342 = vsel %vm336, %v332, %v333
        %v343 = vsel %vm338, %v321, %v342
        %v344 = vsel %vm336, %v334, %v335
        %v345 = vsel %vm338, %v325, %v344
        %350 = vst [vmem:[#allocation3 + $0x20] sm:$0xff] %v339
        %351 = vst [vmem:[#allocation3 + $0x28] sm:$0xff] %v341
        %352 = vst [vmem:[#allocation3 + $0x30] sm:$0xff] %v343
        %353 = vst [vmem:[#allocation3 + $0x38] sm:$0xff] %v345
        %v354 = vld [vmem:[#allocation2] sm:$0xff]
        %v355 = vld [vmem:[#allocation2 + $0x8] sm:$0xf]
        %v356 = vld [vmem:[#allocation2 + $0xc] sm:$0xff]
        %v357 = vld [vmem:[#allocation2 + $0x14] sm:$0xf]
        %v358 = vld [vmem:[#allocation2 + $0x18] sm:$0xff]
        %v359 = vld [vmem:[#allocation2 + $0x20] sm:$0xf]
        %v360 = vld [vmem:[#allocation2 + $0x24] sm:$0xff]
        %v361 = vld [vmem:[#allocation2 + $0x2c] sm:$0xf]
        %vm362 = vmpackc.low %vm282, %vm281
        %v363 = vsel %vm362, 65537, 0
        %364 = vrot.lane.b32.xlu0 %v363, 2
        %v365 = vpop.permute.xlu0 %364
        %v366 = vrot.slane %v365, 4
        %vm367 = vcmask 15360
        %v368 = vsel %vm367, %v366, %v365
        %v369 = vunpack.c.l.b16 %v368
        %v370 = vunpack.c.h.b16 %v368
        %v371 = vunpack.c.l.b16 0
        %v372 = vunpack.c.h.b16 0
        %vm373 = vcmp.ne.s32.totalorder %v369, %v371
        %vm374 = vcmp.ne.s32.totalorder %v370, %v372
        %vm375 = vmpackc.low %vm374, %vm373
        %v376 = vunpack.c.l.b16 %v366
        %v377 = vunpack.c.h.b16 %v366
        %v378 = vunpack.c.l.b16 0
        %v379 = vunpack.c.h.b16 0
        %vm380 = vcmp.ne.s32.totalorder %v376, %v378
        %vm381 = vcmp.ne.s32.totalorder %v377, %v379
        %vm382 = vmpackc.low %vm381, %vm380
        %v383 = vsel %vm375, %v354, 0
        %v384 = vsel %vm382, %v355, 0
        %v385 = vsel %vm375, %v356, 0
        %v386 = vsel %vm382, %v357, 0
        %v387 = vsel %vm375, %v358, 0
        %v388 = vsel %vm382, %v359, 0
        %v389 = vsel %vm375, %v360, 0
        %v390 = vsel %vm382, %v361, 0
        %399 = vrot.lane.b32.xlu0 %v383, 126
        %v400 = vpop.permute.xlu0 %399
        %401 = vrot.lane.b32.xlu0 %v384, 126
        %v402 = vpop.permute.xlu0 %401
        %403 = vrot.lane.b32.xlu0 %v385, 126
        %v404 = vpop.permute.xlu0 %403
        %405 = vrot.lane.b32.xlu0 %v386, 126
        %v406 = vpop.permute.xlu0 %405
        %407 = vrot.lane.b32.xlu0 %v387, 126
        %v408 = vpop.permute.xlu0 %407
        %409 = vrot.lane.b32.xlu0 %v388, 126
        %v410 = vpop.permute.xlu0 %409
        %411 = vrot.lane.b32.xlu0 %v389, 126
        %v412 = vpop.permute.xlu0 %411
        %413 = vrot.lane.b32.xlu0 %v390, 126
        %v414 = vpop.permute.xlu0 %413
        %v415 = vrot.slane %v400, 4
        %v416 = vrot.slane %v402, 4
        %v417 = vrot.slane %v404, 4
        %v418 = vrot.slane %v406, 4
        %v419 = vrot.slane %v408, 4
        %v420 = vrot.slane %v410, 4
        %v421 = vrot.slane %v412, 4
        %v422 = vrot.slane %v414, 4
        %v423 = vsel %vm336, %v415, %v416
        %vm424 = vcmask 1031168
        %v425 = vsel %vm424, %v400, %v423
        %v426 = vsel %vm336, %v417, %v418
        %v427 = vsel %vm424, %v404, %v426
        %v428 = vsel %vm336, %v419, %v420
        %v429 = vsel %vm424, %v408, %v428
        %v430 = vsel %vm336, %v421, %v422
        %v431 = vsel %vm424, %v412, %v430
        %436 = vst [vmem:[#allocation3 + $0x40] sm:$0xff] %v425
        %437 = vst [vmem:[#allocation3 + $0x48] sm:$0xff] %v427
        %438 = vst [vmem:[#allocation3 + $0x50] sm:$0xff] %v429
        %439 = vst [vmem:[#allocation3 + $0x58] sm:$0xff] %v431
        %v440 = vld [vmem:[#allocation2] sm:$0xff]
        %v441 = vld [vmem:[#allocation2 + $0x8] sm:$0xf]
        %v442 = vld [vmem:[#allocation2 + $0xc] sm:$0xff]
        %v443 = vld [vmem:[#allocation2 + $0x14] sm:$0xf]
        %v444 = vld [vmem:[#allocation2 + $0x18] sm:$0xff]
        %v445 = vld [vmem:[#allocation2 + $0x20] sm:$0xf]
        %v446 = vld [vmem:[#allocation2 + $0x24] sm:$0xff]
        %v447 = vld [vmem:[#allocation2 + $0x2c] sm:$0xf]
        %v448 = vsel %vm287, 65537, 0
        %449 = vrot.lane.b32.xlu0 %v448, 16
        %v450 = vpop.permute.xlu0 %449
        %v451 = vrot.slane %v450, 4
        %vm452 = vcmask 130048
        %v453 = vsel %vm452, %v451, %v450
        %v454 = vunpack.c.l.b16 %v453
        %v455 = vunpack.c.h.b16 %v453
        %v456 = vunpack.c.l.b16 0
        %v457 = vunpack.c.h.b16 0
        %vm458 = vcmp.ne.s32.totalorder %v454, %v456
        %vm459 = vcmp.ne.s32.totalorder %v455, %v457
        %vm460 = vmpackc.low %vm459, %vm458
        %v461 = vunpack.c.l.b16 %v451
        %v462 = vunpack.c.h.b16 %v451
        %v463 = vunpack.c.l.b16 0
        %v464 = vunpack.c.h.b16 0
        %vm465 = vcmp.ne.s32.totalorder %v461, %v463
        %vm466 = vcmp.ne.s32.totalorder %v462, %v464
        %vm467 = vmpackc.low %vm466, %vm465
        %v468 = vsel %vm460, %v440, 0
        %v469 = vsel %vm467, %v441, 0
        %v470 = vsel %vm460, %v442, 0
        %v471 = vsel %vm467, %v443, 0
        %v472 = vsel %vm460, %v444, 0
        %v473 = vsel %vm467, %v445, 0
        %v474 = vsel %vm460, %v446, 0
        %v475 = vsel %vm467, %v447, 0
        %484 = vrot.lane.b32.xlu0 %v468, 112
        %v485 = vpop.permute.xlu0 %484
        %486 = vrot.lane.b32.xlu0 %v469, 112
        %v487 = vpop.permute.xlu0 %486
        %488 = vrot.lane.b32.xlu0 %v470, 112
        %v489 = vpop.permute.xlu0 %488
        %490 = vrot.lane.b32.xlu0 %v471, 112
        %v491 = vpop.permute.xlu0 %490
        %492 = vrot.lane.b32.xlu0 %v472, 112
        %v493 = vpop.permute.xlu0 %492
        %494 = vrot.lane.b32.xlu0 %v473, 112
        %v495 = vpop.permute.xlu0 %494
        %496 = vrot.lane.b32.xlu0 %v474, 112
        %v497 = vpop.permute.xlu0 %496
        %498 = vrot.lane.b32.xlu0 %v475, 112
        %v499 = vpop.permute.xlu0 %498
        %v500 = vrot.slane %v485, 4
        %v501 = vrot.slane %v487, 4
        %v502 = vrot.slane %v489, 4
        %v503 = vrot.slane %v491, 4
        %v504 = vrot.slane %v493, 4
        %v505 = vrot.slane %v495, 4
        %v506 = vrot.slane %v497, 4
        %v507 = vrot.slane %v499, 4
        %v508 = vsel %vm336, %v500, %v501
        %vm509 = vcmask 916480
        %v510 = vsel %vm509, %v485, %v508
        %v511 = vsel %vm336, %v502, %v503
        %v512 = vsel %vm509, %v489, %v511
        %v513 = vsel %vm336, %v504, %v505
        %v514 = vsel %vm509, %v493, %v513
        %v515 = vsel %vm336, %v506, %v507
        %v516 = vsel %vm509, %v497, %v515
        %521 = vst [vmem:[#allocation3 + $0x60] sm:$0xff] %v510
        %522 = vst [vmem:[#allocation3 + $0x68] sm:$0xff] %v512
        %523 = vst [vmem:[#allocation3 + $0x70] sm:$0xff] %v514
        %524 = vst [vmem:[#allocation3 + $0x78] sm:$0xff] %v516
        %v525 = vld [vmem:[#allocation2] sm:$0xff]
        %v526 = vld [vmem:[#allocation2 + $0x8] sm:$0xf]
        %v527 = vld [vmem:[#allocation2 + $0xc] sm:$0xff]
        %v528 = vld [vmem:[#allocation2 + $0x14] sm:$0xf]
        %v529 = vld [vmem:[#allocation2 + $0x18] sm:$0xff]
        %v530 = vld [vmem:[#allocation2 + $0x20] sm:$0xf]
        %v531 = vld [vmem:[#allocation2 + $0x24] sm:$0xff]
        %v532 = vld [vmem:[#allocation2 + $0x2c] sm:$0xf]
        %541 = vrot.lane.b32.xlu0 %v525, 111
        %v542 = vpop.permute.xlu0 %541
        %543 = vrot.lane.b32.xlu0 %v526, 111
        %v544 = vpop.permute.xlu0 %543
        %545 = vrot.lane.b32.xlu0 %v527, 111
        %v546 = vpop.permute.xlu0 %545
        %547 = vrot.lane.b32.xlu0 %v528, 111
        %v548 = vpop.permute.xlu0 %547
        %549 = vrot.lane.b32.xlu0 %v529, 111
        %v550 = vpop.permute.xlu0 %549
        %551 = vrot.lane.b32.xlu0 %v530, 111
        %v552 = vpop.permute.xlu0 %551
        %553 = vrot.lane.b32.xlu0 %v531, 111
        %v554 = vpop.permute.xlu0 %553
        %555 = vrot.lane.b32.xlu0 %v532, 111
        %v556 = vpop.permute.xlu0 %555
        %v557 = vrot.slane %v542, 4
        %v558 = vrot.slane %v544, 4
        %v559 = vrot.slane %v546, 4
        %v560 = vrot.slane %v548, 4
        %v561 = vrot.slane %v550, 4
        %v562 = vrot.slane %v552, 4
        %v563 = vrot.slane %v554, 4
        %v564 = vrot.slane %v556, 4
        %v565 = vsel %vm336, %v557, %v558
        %vm566 = vcmask 908288
        %v567 = vsel %vm566, %v542, %v565
        %v568 = vsel %vm336, %v559, %v560
        %v569 = vsel %vm566, %v546, %v568
        %v570 = vsel %vm336, %v561, %v562
        %v571 = vsel %vm566, %v550, %v570
        %v572 = vsel %vm336, %v563, %v564
        %v573 = vsel %vm566, %v554, %v572
        %578 = vst [vmem:[#allocation3 + $0x80] sm:$0xff] %v567
        %579 = vst [vmem:[#allocation3 + $0x88] sm:$0xff] %v569
        %580 = vst [vmem:[#allocation3 + $0x90] sm:$0xff] %v571
        %581 = vst [vmem:[#allocation3 + $0x98] sm:$0xff] %v573
        %v582 = vld [vmem:[#allocation2] sm:$0xff]
        %v583 = vld [vmem:[#allocation2 + $0x8] sm:$0xf]
        %v584 = vld [vmem:[#allocation2 + $0xc] sm:$0xff]
        %v585 = vld [vmem:[#allocation2 + $0x14] sm:$0xf]
        %v586 = vld [vmem:[#allocation2 + $0x18] sm:$0xff]
        %v587 = vld [vmem:[#allocation2 + $0x20] sm:$0xf]
        %v588 = vld [vmem:[#allocation2 + $0x24] sm:$0xff]
        %v589 = vld [vmem:[#allocation2 + $0x2c] sm:$0xf]
        %590 = vrot.lane.b32.xlu0 %v363, 18
        %v591 = vpop.permute.xlu0 %590
        %v592 = vrot.slane %v591, 4
        %vm593 = vcmask 146432
        %v594 = vsel %vm593, %v592, %v591
        %v595 = vunpack.c.l.b16 %v594
        %v596 = vunpack.c.h.b16 %v594
        %v597 = vunpack.c.l.b16 0
        %v598 = vunpack.c.h.b16 0
        %vm599 = vcmp.ne.s32.totalorder %v595, %v597
        %vm600 = vcmp.ne.s32.totalorder %v596, %v598
        %vm601 = vmpackc.low %vm600, %vm599
        %v602 = vunpack.c.l.b16 %v592
        %v603 = vunpack.c.h.b16 %v592
        %v604 = vunpack.c.l.b16 0
        %v605 = vunpack.c.h.b16 0
        %vm606 = vcmp.ne.s32.totalorder %v602, %v604
        %vm607 = vcmp.ne.s32.totalorder %v603, %v605
        %vm608 = vmpackc.low %vm607, %vm606
        %v609 = vsel %vm601, %v582, 0
        %v610 = vsel %vm608, %v583, 0
        %v611 = vsel %vm601, %v584, 0
        %v612 = vsel %vm608, %v585, 0
        %v613 = vsel %vm601, %v586, 0
        %v614 = vsel %vm608, %v587, 0
        %v615 = vsel %vm601, %v588, 0
        %v616 = vsel %vm608, %v589, 0
        %625 = vrot.lane.b32.xlu0 %v609, 110
        %v626 = vpop.permute.xlu0 %625
        %627 = vrot.lane.b32.xlu0 %v610, 110
        %v628 = vpop.permute.xlu0 %627
        %629 = vrot.lane.b32.xlu0 %v611, 110
        %v630 = vpop.permute.xlu0 %629
        %631 = vrot.lane.b32.xlu0 %v612, 110
        %v632 = vpop.permute.xlu0 %631
        %633 = vrot.lane.b32.xlu0 %v613, 110
        %v634 = vpop.permute.xlu0 %633
        %635 = vrot.lane.b32.xlu0 %v614, 110
        %v636 = vpop.permute.xlu0 %635
        %637 = vrot.lane.b32.xlu0 %v615, 110
        %v638 = vpop.permute.xlu0 %637
        %639 = vrot.lane.b32.xlu0 %v616, 110
        %v640 = vpop.permute.xlu0 %639
        %v641 = vrot.slane %v626, 4
        %v642 = vrot.slane %v628, 4
        %v643 = vrot.slane %v630, 4
        %v644 = vrot.slane %v632, 4
        %v645 = vrot.slane %v634, 4
        %v646 = vrot.slane %v636, 4
        %v647 = vrot.slane %v638, 4
        %v648 = vrot.slane %v640, 4
        %v649 = vsel %vm336, %v641, %v642
        %vm650 = vcmask 900096
        %v651 = vsel %vm650, %v626, %v649
        %v652 = vsel %vm336, %v643, %v644
        %v653 = vsel %vm650, %v630, %v652
        %v654 = vsel %vm336, %v645, %v646
        %v655 = vsel %vm650, %v634, %v654
        %v656 = vsel %vm336, %v647, %v648
        %v657 = vsel %vm650, %v638, %v656
        %662 = vst [vmem:[#allocation3 + $0xa0] sm:$0xff] %v651
        %663 = vst [vmem:[#allocation3 + $0xa8] sm:$0xff] %v653
        %664 = vst [vmem:[#allocation3 + $0xb0] sm:$0xff] %v655
        %665 = vst [vmem:[#allocation3 + $0xb8] sm:$0xff] %v657
        %v666 = vld [vmem:[#allocation2] sm:$0xff]
        %v667 = vld [vmem:[#allocation2 + $0x8] sm:$0xf]
        %v668 = vld [vmem:[#allocation2 + $0xc] sm:$0xff]
        %v669 = vld [vmem:[#allocation2 + $0x14] sm:$0xf]
        %v670 = vld [vmem:[#allocation2 + $0x18] sm:$0xff]
        %v671 = vld [vmem:[#allocation2 + $0x20] sm:$0xf]
        %v672 = vld [vmem:[#allocation2 + $0x24] sm:$0xff]
        %v673 = vld [vmem:[#allocation2 + $0x2c] sm:$0xf]
        %674 = vrot.lane.b32.xlu0 %v448, 32
        %v675 = vpop.permute.xlu0 %674
        %v676 = vrot.slane %v675, 4
        %vm677 = vcmask 261120
        %v678 = vsel %vm677, %v676, %v675
        %v679 = vunpack.c.l.b16 %v678
        %v680 = vunpack.c.h.b16 %v678
        %v681 = vunpack.c.l.b16 0
        %v682 = vunpack.c.h.b16 0
        %vm683 = vcmp.ne.s32.totalorder %v679, %v681
        %vm684 = vcmp.ne.s32.totalorder %v680, %v682
        %vm685 = vmpackc.low %vm684, %vm683
        %v686 = vunpack.c.l.b16 %v676
        %v687 = vunpack.c.h.b16 %v676
        %v688 = vunpack.c.l.b16 0
        %v689 = vunpack.c.h.b16 0
        %vm690 = vcmp.ne.s32.totalorder %v686, %v688
        %vm691 = vcmp.ne.s32.totalorder %v687, %v689
        %vm692 = vmpackc.low %vm691, %vm690
        %v693 = vsel %vm685, %v666, 0
        %v694 = vsel %vm692, %v667, 0
        %v695 = vsel %vm685, %v668, 0
        %v696 = vsel %vm692, %v669, 0
        %v697 = vsel %vm685, %v670, 0
        %v698 = vsel %vm692, %v671, 0
        %v699 = vsel %vm685, %v672, 0
        %v700 = vsel %vm692, %v673, 0
        %709 = vrot.lane.b32.xlu0 %v693, 96
        %v710 = vpop.permute.xlu0 %709
        %711 = vrot.lane.b32.xlu0 %v694, 96
        %v712 = vpop.permute.xlu0 %711
        %713 = vrot.lane.b32.xlu0 %v695, 96
        %v714 = vpop.permute.xlu0 %713
        %715 = vrot.lane.b32.xlu0 %v696, 96
        %v716 = vpop.permute.xlu0 %715
        %717 = vrot.lane.b32.xlu0 %v697, 96
        %v718 = vpop.permute.xlu0 %717
        %719 = vrot.lane.b32.xlu0 %v698, 96
        %v720 = vpop.permute.xlu0 %719
        %721 = vrot.lane.b32.xlu0 %v699, 96
        %v722 = vpop.permute.xlu0 %721
        %723 = vrot.lane.b32.xlu0 %v700, 96
        %v724 = vpop.permute.xlu0 %723
        %v725 = vrot.slane %v710, 4
        %v726 = vrot.slane %v712, 4
        %v727 = vrot.slane %v714, 4
        %v728 = vrot.slane %v716, 4
        %v729 = vrot.slane %v718, 4
        %v730 = vrot.slane %v720, 4
        %v731 = vrot.slane %v722, 4
        %v732 = vrot.slane %v724, 4
        %v733 = vsel %vm336, %v725, %v726
        %vm734 = vcmask 785408
        %v735 = vsel %vm734, %v710, %v733
        %v736 = vsel %vm336, %v727, %v728
        %v737 = vsel %vm734, %v714, %v736
        %v738 = vsel %vm336, %v729, %v730
        %v739 = vsel %vm734, %v718, %v738
        %v740 = vsel %vm336, %v731, %v732
        %v741 = vsel %vm734, %v722, %v740
        %746 = vst [vmem:[#allocation3 + $0xc0] sm:$0xff] %v735
        %747 = vst [vmem:[#allocation3 + $0xc8] sm:$0xff] %v737
        %748 = vst [vmem:[#allocation3 + $0xd0] sm:$0xff] %v739
        %749 = vst [vmem:[#allocation3 + $0xd8] sm:$0xff] %v741
        %v750 = vld [vmem:[#allocation2] sm:$0xff]
        %v751 = vld [vmem:[#allocation2 + $0x8] sm:$0xf]
        %v752 = vld [vmem:[#allocation2 + $0xc] sm:$0xff]
        %v753 = vld [vmem:[#allocation2 + $0x14] sm:$0xf]
        %v754 = vld [vmem:[#allocation2 + $0x18] sm:$0xff]
        %v755 = vld [vmem:[#allocation2 + $0x20] sm:$0xf]
        %v756 = vld [vmem:[#allocation2 + $0x24] sm:$0xff]
        %v757 = vld [vmem:[#allocation2 + $0x2c] sm:$0xf]
        %766 = vrot.lane.b32.xlu0 %v750, 95
        %v767 = vpop.permute.xlu0 %766
        %768 = vrot.lane.b32.xlu0 %v751, 95
        %v769 = vpop.permute.xlu0 %768
        %770 = vrot.lane.b32.xlu0 %v752, 95
        %v771 = vpop.permute.xlu0 %770
        %772 = vrot.lane.b32.xlu0 %v753, 95
        %v773 = vpop.permute.xlu0 %772
        %774 = vrot.lane.b32.xlu0 %v754, 95
        %v775 = vpop.permute.xlu0 %774
        %776 = vrot.lane.b32.xlu0 %v755, 95
        %v777 = vpop.permute.xlu0 %776
        %778 = vrot.lane.b32.xlu0 %v756, 95
        %v779 = vpop.permute.xlu0 %778
        %780 = vrot.lane.b32.xlu0 %v757, 95
        %v781 = vpop.permute.xlu0 %780
        %v782 = vrot.slane %v767, 4
        %v783 = vrot.slane %v769, 4
        %v784 = vrot.slane %v771, 4
        %v785 = vrot.slane %v773, 4
        %v786 = vrot.slane %v775, 4
        %v787 = vrot.slane %v777, 4
        %v788 = vrot.slane %v779, 4
        %v789 = vrot.slane %v781, 4
        %v790 = vsel %vm336, %v782, %v783
        %vm791 = vcmask 777216
        %v792 = vsel %vm791, %v767, %v790
        %v793 = vsel %vm336, %v784, %v785
        %v794 = vsel %vm791, %v771, %v793
        %v795 = vsel %vm336, %v786, %v787
        %v796 = vsel %vm791, %v775, %v795
        %v797 = vsel %vm336, %v788, %v789
        %v798 = vsel %vm791, %v779, %v797
        %803 = vst [vmem:[#allocation3 + $0xe0] sm:$0xff] %v792
        %804 = vst [vmem:[#allocation3 + $0xe8] sm:$0xff] %v794
        %805 = vst [vmem:[#allocation3 + $0xf0] sm:$0xff] %v796
        %806 = vst [vmem:[#allocation3 + $0xf8] sm:$0xff] %v798
        %v807 = vld [vmem:[#allocation2] sm:$0xff]
        %v808 = vld [vmem:[#allocation2 + $0x8] sm:$0xf]
        %v809 = vld [vmem:[#allocation2 + $0xc] sm:$0xff]
        %v810 = vld [vmem:[#allocation2 + $0x14] sm:$0xf]
        %v811 = vld [vmem:[#allocation2 + $0x18] sm:$0xff]
        %v812 = vld [vmem:[#allocation2 + $0x20] sm:$0xf]
        %v813 = vld [vmem:[#allocation2 + $0x24] sm:$0xff]
        %v814 = vld [vmem:[#allocation2 + $0x2c] sm:$0xf]
        %815 = vrot.lane.b32.xlu0 %v363, 34
        %v816 = vpop.permute.xlu0 %815
        %v817 = vrot.slane %v816, 4
        %vm818 = vcmask 277504
        %v819 = vsel %vm818, %v817, %v816
        %v820 = vunpack.c.l.b16 %v819
        %v821 = vunpack.c.h.b16 %v819
        %v822 = vunpack.c.l.b16 0
        %v823 = vunpack.c.h.b16 0
        %vm824 = vcmp.ne.s32.totalorder %v820, %v822
        %vm825 = vcmp.ne.s32.totalorder %v821, %v823
        %vm826 = vmpackc.low %vm825, %vm824
        %v827 = vunpack.c.l.b16 %v817
        %v828 = vunpack.c.h.b16 %v817
        %v829 = vunpack.c.l.b16 0
        %v830 = vunpack.c.h.b16 0
        %vm831 = vcmp.ne.s32.totalorder %v827, %v829
        %vm832 = vcmp.ne.s32.totalorder %v828, %v830
        %vm833 = vmpackc.low %vm832, %vm831
        %v834 = vsel %vm826, %v807, 0
        %v835 = vsel %vm833, %v808, 0
        %v836 = vsel %vm826, %v809, 0
        %v837 = vsel %vm833, %v810, 0
        %v838 = vsel %vm826, %v811, 0
        %v839 = vsel %vm833, %v812, 0
        %v840 = vsel %vm826, %v813, 0
        %v841 = vsel %vm833, %v814, 0
        %850 = vrot.lane.b32.xlu0 %v834, 94
        %v851 = vpop.permute.xlu0 %850
        %852 = vrot.lane.b32.xlu0 %v835, 94
        %v853 = vpop.permute.xlu0 %852
        %854 = vrot.lane.b32.xlu0 %v836, 94
        %v855 = vpop.permute.xlu0 %854
        %856 = vrot.lane.b32.xlu0 %v837, 94
        %v857 = vpop.permute.xlu0 %856
        %858 = vrot.lane.b32.xlu0 %v838, 94
        %v859 = vpop.permute.xlu0 %858
        %860 = vrot.lane.b32.xlu0 %v839, 94
        %v861 = vpop.permute.xlu0 %860
        %862 = vrot.lane.b32.xlu0 %v840, 94
        %v863 = vpop.permute.xlu0 %862
        %864 = vrot.lane.b32.xlu0 %v841, 94
        %v865 = vpop.permute.xlu0 %864
        %v866 = vrot.slane %v851, 4
        %v867 = vrot.slane %v853, 4
        %v868 = vrot.slane %v855, 4
        %v869 = vrot.slane %v857, 4
        %v870 = vrot.slane %v859, 4
        %v871 = vrot.slane %v861, 4
        %v872 = vrot.slane %v863, 4
        %v873 = vrot.slane %v865, 4
        %v874 = vsel %vm336, %v866, %v867
        %vm875 = vcmask 769024
        %v876 = vsel %vm875, %v851, %v874
        %v877 = vsel %vm336, %v868, %v869
        %v878 = vsel %vm875, %v855, %v877
        %v879 = vsel %vm336, %v870, %v871
        %v880 = vsel %vm875, %v859, %v879
        %v881 = vsel %vm336, %v872, %v873
        %v882 = vsel %vm875, %v863, %v881
        %887 = vst [vmem:[#allocation3 + $0x100] sm:$0xff] %v876
        %888 = vst [vmem:[#allocation3 + $0x108] sm:$0xff] %v878
        %889 = vst [vmem:[#allocation3 + $0x110] sm:$0xff] %v880
        %890 = vst [vmem:[#allocation3 + $0x118] sm:$0xff] %v882
        %v891 = vld [vmem:[#allocation7] sm:$0xff]
        %v892 = vld [vmem:[#allocation7 + $0x8] sm:$0xf]
        %v893 = vld [vmem:[#allocation7 + $0xc] sm:$0xff]
        %v894 = vld [vmem:[#allocation7 + $0x14] sm:$0xf]
        %v895 = vld [vmem:[#allocation7 + $0x18] sm:$0xff]
        %v896 = vld [vmem:[#allocation7 + $0x20] sm:$0xf]
        %v897 = vld [vmem:[#allocation7 + $0x24] sm:$0xff]
        %v898 = vld [vmem:[#allocation7 + $0x2c] sm:$0xf]
        %v899 = vld [vmem:[#allocation3] sm:$0xff]
        %v900 = vld [vmem:[#allocation3 + $0x8] sm:$0xff]
        %v901 = vld [vmem:[#allocation3 + $0x10] sm:$0xff]
        %v902 = vld [vmem:[#allocation3 + $0x18] sm:$0xff]
        %v903 = vld [vmem:[#allocation3 + $0x20] sm:$0xff]
        %v904 = vld [vmem:[#allocation3 + $0x28] sm:$0xff]
        %v905 = vld [vmem:[#allocation3 + $0x30] sm:$0xff]
        %v906 = vld [vmem:[#allocation3 + $0x38] sm:$0xff]
        %v907 = vld [vmem:[#allocation3 + $0x40] sm:$0xff]
        %v908 = vld [vmem:[#allocation3 + $0x48] sm:$0xff]
        %v909 = vld [vmem:[#allocation3 + $0x50] sm:$0xff]
        %v910 = vld [vmem:[#allocation3 + $0x58] sm:$0xff]
        %v911 = vld [vmem:[#allocation3 + $0x60] sm:$0xff]
        %v912 = vld [vmem:[#allocation3 + $0x68] sm:$0xff]
        %v913 = vld [vmem:[#allocation3 + $0x70] sm:$0xff]
        %v914 = vld [vmem:[#allocation3 + $0x78] sm:$0xff]
        %v915 = vld [vmem:[#allocation3 + $0x80] sm:$0xff]
        %v916 = vld [vmem:[#allocation3 + $0x88] sm:$0xff]
        %v917 = vld [vmem:[#allocation3 + $0x90] sm:$0xff]
        %v918 = vld [vmem:[#allocation3 + $0x98] sm:$0xff]
        %v919 = vld [vmem:[#allocation3 + $0xa0] sm:$0xff]
        %v920 = vld [vmem:[#allocation3 + $0xa8] sm:$0xff]
        %v921 = vld [vmem:[#allocation3 + $0xb0] sm:$0xff]
        %v922 = vld [vmem:[#allocation3 + $0xb8] sm:$0xff]
        %v923 = vld [vmem:[#allocation3 + $0xc0] sm:$0xff]
        %v924 = vld [vmem:[#allocation3 + $0xc8] sm:$0xff]
        %v925 = vld [vmem:[#allocation3 + $0xd0] sm:$0xff]
        %v926 = vld [vmem:[#allocation3 + $0xd8] sm:$0xff]
        %v927 = vld [vmem:[#allocation3 + $0xe0] sm:$0xff]
        %v928 = vld [vmem:[#allocation3 + $0xe8] sm:$0xff]
        %v929 = vld [vmem:[#allocation3 + $0xf0] sm:$0xff]
        %v930 = vld [vmem:[#allocation3 + $0xf8] sm:$0xff]
        %v931 = vld [vmem:[#allocation3 + $0x100] sm:$0xff]
        %v932 = vld [vmem:[#allocation3 + $0x108] sm:$0xff]
        %v933 = vld [vmem:[#allocation3 + $0x110] sm:$0xff]
        %v934 = vld [vmem:[#allocation3 + $0x118] sm:$0xff]
        %v935 = vld [vmem:[%s2] sm:$0xff]
        %v936 = vld [vmem:[%s2 + $0x8] sm:$0xff]
        %v937 = vld [vmem:[%s2 + $0x10] sm:$0xff]
        %v938 = vld [vmem:[%s2 + $0x18] sm:$0xff]
        %940 = vset.pattern.permute.xlu0 0
        %941 = vperm.xlu0 %940, %v935
        %v942 = vpop.permute.xlu0 %941
        %945 = vset.pattern.permute.xlu0 0
        %946 = vperm.xlu0 %945, %v936
        %v947 = vpop.permute.xlu0 %946
        %950 = vset.pattern.permute.xlu0 0
        %951 = vperm.xlu0 %950, %v937
        %v952 = vpop.permute.xlu0 %951
        %955 = vset.pattern.permute.xlu0 0
        %956 = vperm.xlu0 %955, %v938
        %v957 = vpop.permute.xlu0 %956
        %v967 = vunpack.c.l.b16 %v891
        %v968 = vunpack.c.h.b16 %v891
        %v969 = vunpack.c.l.b16 %v892
        %v970 = vunpack.c.l.b16 %v893
        %v971 = vunpack.c.h.b16 %v893
        %v972 = vunpack.c.l.b16 %v894
        %v973 = vunpack.c.l.b16 %v895
        %v974 = vunpack.c.h.b16 %v895
        %v975 = vunpack.c.l.b16 %v896
        %v976 = vunpack.c.l.b16 %v897
        %v977 = vunpack.c.h.b16 %v897
        %v978 = vunpack.c.l.b16 %v898
        %v979 = vpack.c.b16 %v970, %v967
        %v980 = vpack.c.b16 %v971, %v968
        %v981 = vpack.c.b16 %v972, %v969
        %v982 = vpack.c.b16 %v976, %v973
        %v983 = vpack.c.b16 %v977, %v974
        %v984 = vpack.c.b16 %v978, %v975
        %v1025 = vunpack.c.l.b16 %v899
        %v1026 = vunpack.c.h.b16 %v899
        %v1027 = vunpack.c.l.b16 %v900
        %v1028 = vunpack.c.h.b16 %v900
        %v1029 = vunpack.c.l.b16 %v901
        %v1030 = vunpack.c.h.b16 %v901
        %v1031 = vunpack.c.l.b16 %v902
        %v1032 = vunpack.c.h.b16 %v902
        %v1033 = vunpack.c.l.b16 %v903
        %v1034 = vunpack.c.h.b16 %v903
        %v1035 = vunpack.c.l.b16 %v904
        %v1036 = vunpack.c.h.b16 %v904
        %v1037 = vunpack.c.l.b16 %v905
        %v1038 = vunpack.c.h.b16 %v905
        %v1039 = vunpack.c.l.b16 %v906
        %v1040 = vunpack.c.h.b16 %v906
        %v1041 = vunpack.c.l.b16 %v907
        %v1042 = vunpack.c.h.b16 %v907
        %v1043 = vunpack.c.l.b16 %v908
        %v1044 = vunpack.c.h.b16 %v908
        %v1045 = vunpack.c.l.b16 %v909
        %v1046 = vunpack.c.h.b16 %v909
        %v1047 = vunpack.c.l.b16 %v910
        %v1048 = vunpack.c.h.b16 %v910
        %v1049 = vunpack.c.l.b16 %v911
        %v1050 = vunpack.c.h.b16 %v911
        %v1051 = vunpack.c.l.b16 %v912
        %v1052 = vunpack.c.h.b16 %v912
        %v1053 = vunpack.c.l.b16 %v913
        %v1054 = vunpack.c.h.b16 %v913
        %v1055 = vunpack.c.l.b16 %v914
        %v1056 = vunpack.c.h.b16 %v914
        %v1057 = vunpack.c.l.b16 %v915
        %v1058 = vunpack.c.h.b16 %v915
        %v1059 = vunpack.c.l.b16 %v916
        %v1060 = vunpack.c.h.b16 %v916
        %v1061 = vunpack.c.l.b16 %v917
        %v1062 = vunpack.c.h.b16 %v917
        %v1063 = vunpack.c.l.b16 %v918
        %v1064 = vunpack.c.h.b16 %v918
        %v1065 = vunpack.c.l.b16 %v919
        %v1066 = vunpack.c.h.b16 %v919
        %v1067 = vunpack.c.l.b16 %v920
        %v1068 = vunpack.c.h.b16 %v920
        %v1069 = vunpack.c.l.b16 %v921
        %v1070 = vunpack.c.h.b16 %v921
        %v1071 = vunpack.c.l.b16 %v922
        %v1072 = vunpack.c.h.b16 %v922
        %v1073 = vunpack.c.l.b16 %v923
        %v1074 = vunpack.c.h.b16 %v923
        %v1075 = vunpack.c.l.b16 %v924
        %v1076 = vunpack.c.h.b16 %v924
        %v1077 = vunpack.c.l.b16 %v925
        %v1078 = vunpack.c.h.b16 %v925
        %v1079 = vunpack.c.l.b16 %v926
        %v1080 = vunpack.c.h.b16 %v926
        %v1081 = vunpack.c.l.b16 %v927
        %v1082 = vunpack.c.h.b16 %v927
        %v1083 = vunpack.c.l.b16 %v928
        %v1084 = vunpack.c.h.b16 %v928
        %v1085 = vunpack.c.l.b16 %v929
        %v1086 = vunpack.c.h.b16 %v929
        %v1087 = vunpack.c.l.b16 %v930
        %v1088 = vunpack.c.h.b16 %v930
        %v1089 = vunpack.c.l.b16 %v931
        %v1090 = vunpack.c.h.b16 %v931
        %v1091 = vunpack.c.l.b16 %v932
        %v1092 = vunpack.c.h.b16 %v932
        %v1093 = vunpack.c.l.b16 %v933
        %v1094 = vunpack.c.h.b16 %v933
        %v1095 = vunpack.c.l.b16 %v934
        %v1096 = vunpack.c.h.b16 %v934
        %v1097 = vpack.c.b16 %v1027, %v1025
        %v1098 = vpack.c.b16 %v1028, %v1026
        %v1099 = vpack.c.b16 %v1031, %v1029
        %v1100 = vpack.c.b16 %v1032, %v1030
        %v1101 = vpack.c.b16 %v1035, %v1033
        %v1102 = vpack.c.b16 %v1036, %v1034
        %v1103 = vpack.c.b16 %v1039, %v1037
        %v1104 = vpack.c.b16 %v1040, %v1038
        %v1105 = vpack.c.b16 %v1043, %v1041
        %v1106 = vpack.c.b16 %v1044, %v1042
        %v1107 = vpack.c.b16 %v1047, %v1045
        %v1108 = vpack.c.b16 %v1048, %v1046
        %v1109 = vpack.c.b16 %v1051, %v1049
        %v1110 = vpack.c.b16 %v1052, %v1050
        %v1111 = vpack.c.b16 %v1055, %v1053
        %v1112 = vpack.c.b16 %v1056, %v1054
        %v1113 = vpack.c.b16 %v1059, %v1057
        %v1114 = vpack.c.b16 %v1060, %v1058
        %v1115 = vpack.c.b16 %v1063, %v1061
        %v1116 = vpack.c.b16 %v1064, %v1062
        %v1117 = vpack.c.b16 %v1067, %v1065
        %v1118 = vpack.c.b16 %v1068, %v1066
        %v1119 = vpack.c.b16 %v1071, %v1069
        %v1120 = vpack.c.b16 %v1072, %v1070
        %v1121 = vpack.c.b16 %v1075, %v1073
        %v1122 = vpack.c.b16 %v1076, %v1074
        %v1123 = vpack.c.b16 %v1079, %v1077
        %v1124 = vpack.c.b16 %v1080, %v1078
        %v1125 = vpack.c.b16 %v1083, %v1081
        %v1126 = vpack.c.b16 %v1084, %v1082
        %v1127 = vpack.c.b16 %v1087, %v1085
        %v1128 = vpack.c.b16 %v1088, %v1086
        %v1129 = vpack.c.b16 %v1091, %v1089
        %v1130 = vpack.c.b16 %v1092, %v1090
        %v1131 = vpack.c.b16 %v1095, %v1093
        %v1132 = vpack.c.b16 %v1096, %v1094
        %vm1169 = vcmask 261120
        %v1171 = vsel %vm1169, %v981, 0
        %v1174 = vsel %vm1169, %v984, 0
        %1176 = vmatpush.bf16.msra.mxu0 %v1111
        %1177 = vmatpush.bf16.msra.mxu0 %v1109
        %1178 = vmatpush.bf16.msra.mxu0 %v1107
        %1179 = vmatpush.bf16.msra.mxu0 %v1105
        %1180 = vmatpush.bf16.msra.mxu0 %v1103
        %1181 = vmatpush.bf16.msra.mxu0 %v1101
        %1182 = vmatpush.bf16.msra.mxu0 %v1099
        %1183 = vmatpush.bf16.msra.mxu0 %v1097
        %1184 = vmatmul.bf16.gmra.mxu0 %v979
        %v1185 = vpop.f32.mrf.mxu0
        %v1186 = vadd.f32 %v942, %v1185
        %v1187 = vpop.f32.mrf.mxu0
        %v1188 = vadd.f32 %v947, %v1187
        %1189 = vmatmul.bf16.gmra.mxu0 %v982
        %v1190 = vpop.f32.mrf.mxu0
        %v1191 = vadd.f32 %v952, %v1190
        %v1192 = vpop.f32.mrf.mxu0
        %v1193 = vadd.f32 %v957, %v1192
        %1194 = vdwg.mxu0
        %1195 = vmatpush.bf16.msra.mxu0 %v1127
        %1196 = vmatpush.bf16.msra.mxu0 %v1125
        %1197 = vmatpush.bf16.msra.mxu0 %v1123
        %1198 = vmatpush.bf16.msra.mxu0 %v1121
        %1199 = vmatpush.bf16.msra.mxu0 %v1119
        %1200 = vmatpush.bf16.msra.mxu0 %v1117
        %1201 = vmatpush.bf16.msra.mxu0 %v1115
        %1202 = vmatpush.bf16.msra.mxu0 %v1113
        %1203 = vmatmul.bf16.gmra.mxu0 %v980
        %v1204 = vpop.f32.mrf.mxu0
        %v1205 = vadd.f32 %v1186, %v1204
        %v1206 = vpop.f32.mrf.mxu0
        %v1207 = vadd.f32 %v1188, %v1206
        %1208 = vmatmul.bf16.gmra.mxu0 %v983
        %v1209 = vpop.f32.mrf.mxu0
        %v1210 = vadd.f32 %v1191, %v1209
        %v1211 = vpop.f32.mrf.mxu0
        %v1212 = vadd.f32 %v1193, %v1211
        %1213 = vdwg.mxu0
        %1214 = vmatpush.bf16.msra.mxu0 0
        %1215 = vmatpush.bf16.msra.mxu0 0
        %1216 = vmatpush.bf16.msra.mxu0 0
        %1217 = vmatpush.bf16.msra.mxu0 0
        %1218 = vmatpush.bf16.msra.mxu0 0
        %1219 = vmatpush.bf16.msra.mxu0 0
        %1220 = vmatpush.bf16.msra.mxu0 %v1131
        %1221 = vmatpush.bf16.msra.mxu0 %v1129
        %1222 = vmatmul.bf16.gmra.mxu0 %v1171
        %v1223 = vpop.f32.mrf.mxu0
        %v1224 = vadd.f32 %v1205, %v1223
        %v1225 = vpop.f32.mrf.mxu0
        %v1226 = vadd.f32 %v1207, %v1225
        %1227 = vmatmul.bf16.gmra.mxu0 %v1174
        %v1228 = vpop.f32.mrf.mxu0
        %v1229 = vadd.f32 %v1210, %v1228
        %v1230 = vpop.f32.mrf.mxu0
        %v1231 = vadd.f32 %v1212, %v1230
        %1232 = vdwg.mxu0
        %1233 = vmatpush.bf16.msra.mxu0 %v1112
        %1234 = vmatpush.bf16.msra.mxu0 %v1110
        %1235 = vmatpush.bf16.msra.mxu0 %v1108
        %1236 = vmatpush.bf16.msra.mxu0 %v1106
        %1237 = vmatpush.bf16.msra.mxu0 %v1104
        %1238 = vmatpush.bf16.msra.mxu0 %v1102
        %1239 = vmatpush.bf16.msra.mxu0 %v1100
        %1240 = vmatpush.bf16.msra.mxu0 %v1098
        %1241 = vmatmul.bf16.gmra.mxu0 %v979
        %v1242 = vpop.f32.mrf.mxu0
        %v1243 = vadd.f32 %v942, %v1242
        %v1244 = vpop.f32.mrf.mxu0
        %v1245 = vadd.f32 %v947, %v1244
        %1246 = vmatmul.bf16.gmra.mxu0 %v982
        %v1247 = vpop.f32.mrf.mxu0
        %v1248 = vadd.f32 %v952, %v1247
        %v1249 = vpop.f32.mrf.mxu0
        %v1250 = vadd.f32 %v957, %v1249
        %1251 = vdwg.mxu0
        %1252 = vmatpush.bf16.msra.mxu0 %v1128
        %1253 = vmatpush.bf16.msra.mxu0 %v1126
        %1254 = vmatpush.bf16.msra.mxu0 %v1124
        %1255 = vmatpush.bf16.msra.mxu0 %v1122
        %1256 = vmatpush.bf16.msra.mxu0 %v1120
        %1257 = vmatpush.bf16.msra.mxu0 %v1118
        %1258 = vmatpush.bf16.msra.mxu0 %v1116
        %1259 = vmatpush.bf16.msra.mxu0 %v1114
        %1260 = vmatmul.bf16.gmra.mxu0 %v980
        %v1261 = vpop.f32.mrf.mxu0
        %v1262 = vadd.f32 %v1243, %v1261
        %v1263 = vpop.f32.mrf.mxu0
        %v1264 = vadd.f32 %v1245, %v1263
        %1265 = vmatmul.bf16.gmra.mxu0 %v983
        %v1266 = vpop.f32.mrf.mxu0
        %v1267 = vadd.f32 %v1248, %v1266
        %v1268 = vpop.f32.mrf.mxu0
        %v1269 = vadd.f32 %v1250, %v1268
        %1270 = vdwg.mxu0
        %1271 = vmatpush.bf16.msra.mxu0 0
        %1272 = vmatpush.bf16.msra.mxu0 0
        %1273 = vmatpush.bf16.msra.mxu0 0
        %1274 = vmatpush.bf16.msra.mxu0 0
        %1275 = vmatpush.bf16.msra.mxu0 0
        %1276 = vmatpush.bf16.msra.mxu0 0
        %1277 = vmatpush.bf16.msra.mxu0 %v1132
        %1278 = vmatpush.bf16.msra.mxu0 %v1130
        %1279 = vmatmul.bf16.gmra.mxu0 %v1171
        %v1280 = vpop.f32.mrf.mxu0
        %v1281 = vadd.f32 %v1262, %v1280
        %v1282 = vpop.f32.mrf.mxu0
        %v1283 = vadd.f32 %v1264, %v1282
        %1284 = vmatmul.bf16.gmra.mxu0 %v1174
        %v1285 = vpop.f32.mrf.mxu0
        %v1286 = vadd.f32 %v1267, %v1285
        %v1287 = vpop.f32.mrf.mxu0
        %v1288 = vadd.f32 %v1269, %v1287
        %1289 = vdwg.mxu0
        %1290 = vst [vmem:[%s207] sm:$0xff] %v1224
        %1291 = vst [vmem:[%s207 + $0x8] sm:$0xff] %v1281
        %1292 = vst [vmem:[%s207 + $0x10] sm:$0xff] %v1226
        %1293 = vst [vmem:[%s207 + $0x18] sm:$0xff] %v1283
        %1294 = vst [vmem:[%s207 + $0x20] sm:$0xff] %v1229
        %1295 = vst [vmem:[%s207 + $0x28] sm:$0xff] %v1286
        %1296 = vst [vmem:[%s207 + $0x30] sm:$0xff] %v1231
        %1297 = vst [vmem:[%s207 + $0x38] sm:$0xff] %v1288
        %s1298 = sand.u32 %s97, 1
        %s1299 = scalar_lea.sflag [#allocation6], %s1298
        %s1300 = sand.u32 %s97, 1
        %s1301 = smul.addr %s1300, 64
        %s1302 = scalar_lea.vmem [#allocation9], %s1301
        // Predicated region
        $region41: #{tpu_custom_call.1} parent=31 // pred_check
          %p1303 = pneg %p107
        $region42: #{tpu_custom_call.1} parent=31 // pred_check_branch
          %1305 = sbr.rel (%p1303) target = $region44
        $region43: #{tpu_custom_call.1} parent=31 // pred_region
          %s1306 = smul.u32 4, %s21
          %1308 = vsyncadd %s1299, 0
          %s1309 = smul.addr %s1306, 2
          %s1310 = smul.addr %s1309, 8
          %s1311 = scalar_lea.hbm %s3, %s1310
          %s1312 = sshll.u32 %s1302, 4
          %s1313 = int_to_ptr.vmem [resolvable:$true] %s1312
          %s1314 = sshll.u32 %s1311, 4
          %s1315 = int_to_ptr.hbm [resolvable:$true] %s1314
          %1320 = dma.vmem_to_hbm [thread:$0]  %s1313, 1024, %s1315, %s1299, 256, 256, 16
        $region44: #{tpu_custom_call.1} parent=31 // pred_fallthru
          _
      $region32: #{tpu_custom_call.1} parent=5 // pred_fallthru
        _
      %p1321 = scmp.le.s32.totalorder 2, %s16
      // Predicated region
      $region45: #{tpu_custom_call.1} parent=5 // pred_check
        %p1322 = pneg %p1321
      $region46: #{tpu_custom_call.1} parent=5 // pred_check_branch
        %1324 = sbr.rel (%p1322) target = $region48
      $region47: #{tpu_custom_call.1} parent=5 // pred_region
        %s1325 = ssub.s32 %s16, 2
        // Predicated region
        $region49: #{tpu_custom_call.1} parent=47 // pred_check
          %p1326 = pneg %p113
        $region50: #{tpu_custom_call.1} parent=47 // pred_check_branch
          %1328 = sbr.rel (%p1326) target = $region52
        $region51: #{tpu_custom_call.1} parent=47 // pred_region
          %s1329 = sand.u32 %s98, 1
          %s1330 = scalar_lea.sflag [#allocation6], %s1329
          %s1331 = sand.u32 %s98, 1
          %s1332 = smul.addr %s1331, 64
          %s1333 = scalar_lea.vmem [#allocation9], %s1332
          %1335 = dma.done %s1330, 1024
        $region52: #{tpu_custom_call.1} parent=47 // pred_fallthru
          _
      $region48: #{tpu_custom_call.1} parent=5 // pred_fallthru
        _
    $region6: #{tpu_custom_call.1} parent=1 // loop_footer
      %s20 = sadd.s32 1, %s16
    $region7: #{tpu_custom_call.1} parent=1 // loop_footer_branch
      %15 = sbr.rel target = $region3
    $region8: #{tpu_custom_call.1} parent=1 // loop_exit
      _
    %1336 = vsyncpa [#allocation5], 1
    %s1337 = scalar_lea.sflag [#allocation5], 1
    %1338 = vsyncpa %s1337, 1
    %1339 = vsyncpa [#allocation8], 1
    %1340 = vsyncpa [#allocation6], 1
    %s1341 = scalar_lea.sflag [#allocation6], 1
    %1342 = vsyncpa %s1341, 1

</llo_original>
